<compile_context>
chip_gen: v7x
topology: tpu7x:2x2x1
jax: 0.10.0
libtpu: 0.0.40
codegen_flags: <defaults>
</compile_context>

<pallas_src>
import functools

import jax
import jax.numpy as jnp
from jax.experimental import pallas as pl
from jax.experimental.pallas import tpu as pltpu


def asd_loss_kernel(logits_ref, labels_ref, atts_ref, onehots_ref, out_ref,
                    *, n_valid, num_atts):
    """One batch tile: accumulate partial CE / BCE sums into out_ref (SMEM).

    logits_ref:  (tile_n, C)  native dtype (batch on sublanes, classes on lanes)
    labels_ref:  (tile_n, 1)  int
    atts_ref:    (tile_n, A)  native dtype
    onehots_ref: (tile_n, A)  native dtype
    out_ref:     (2,) f32 SMEM   [ce_sum -> ce_mean, bce_sum -> bce_mean]
    """
    pid = pl.program_id(0)
    last = pl.num_programs(0) - 1

    @pl.when(pid == 0)
    def _init():
        out_ref[0] = 0.0
        out_ref[1] = 0.0

    logits = logits_ref[...].astype(jnp.float32)            # (tile_n, C)
    tile_n, num_classes = logits.shape
    labels = labels_ref[...].astype(jnp.int32)               # (tile_n, 1)

    # Valid-row mask for the ragged last tile.  jnp.where (select) is used so
    # NaN/Inf garbage in the unwritten VMEM tail cannot propagate (no 0*Inf).
    row = jax.lax.broadcasted_iota(jnp.int32, (tile_n, 1), 0) + pid * tile_n
    row_ok = row < n_valid                                   # (tile_n, 1) bool

    # ---- CrossEntropy partial: nll = logsumexp(logits) - logits[label]
    m = jnp.max(logits, axis=1, keepdims=True)                # (tile_n, 1)
    lse = m + jnp.log(jnp.sum(jnp.exp(logits - m), axis=1, keepdims=True))
    cls = jax.lax.broadcasted_iota(jnp.int32, (tile_n, num_classes), 1)
    label_logit = jnp.sum(jnp.where(cls == labels, logits, 0.0),
                          axis=1, keepdims=True)              # (tile_n, 1)
    ce_part = jnp.sum(jnp.where(row_ok, lse - label_logit, 0.0))

    # ---- BCEWithLogits partial: max(x,0) - x*y + log1p(exp(-|x|))
    x = atts_ref[...].astype(jnp.float32)                     # (tile_n, A)
    y = onehots_ref[...].astype(jnp.float32)
    per_elem = jnp.maximum(x, 0.0) - x * y + jnp.log1p(jnp.exp(-jnp.abs(x)))
    bce_rows = jnp.sum(per_elem, axis=1, keepdims=True)       # (tile_n, 1)
    bce_part = jnp.sum(jnp.where(row_ok, bce_rows, 0.0))

    out_ref[0] = out_ref[0] + ce_part
    out_ref[1] = out_ref[1] + bce_part

    @pl.when(pid == last)
    def _finalize():
        out_ref[0] = out_ref[0] * (1.0 / n_valid)                 # mean over N
        out_ref[1] = out_ref[1] * (1.0 / (n_valid * num_atts))    # mean over N*A


def asd_loss(out_classes, out_atts, labels, one_hots):
    """Returns (loss, ce_loss, bce_loss) exactly like ASDLoss.forward."""
    N, C = out_classes.shape
    A = out_atts.shape[1]

    # Only free metadata reshape of labels; big arrays go in untouched
    # (native layout, native dtype, no padding).
    labels_2d = labels.reshape(N, 1)

    # Tile sizing: conservative VMEM estimate assuming (8,128) lane padding of
    # the small minor dims; double-buffered set kept around ~24 MiB, which fits
    # the explicit 32 MiB vmem limit on every generation (v5e/v6e/v7x).
    def _pad_lanes(d):
        return ((d + 127) // 128) * 128

    row_vmem = 4 * (_pad_lanes(C) + 2 * _pad_lanes(A) + 128)   # bytes / batch row
    budget = 12 * 1024 * 1024                                  # per buffered set
    tile_n = budget // row_vmem
    tile_n = max(256, min(8192, (tile_n // 256) * 256))
    if N <= tile_n:
        tile_n = N                      # single full block (any N allowed)
    grid_n = (N + tile_n - 1) // tile_n

    kernel = functools.partial(asd_loss_kernel, n_valid=N, num_atts=A)

    isz = lambda a: jnp.dtype(a.dtype).itemsize
    cost = pl.CostEstimate(
        flops=N * (6 * C + 8 * A),
        transcendentals=N * (C + 1 + 2 * A),
        bytes_accessed=int(N * (C * isz(out_classes)
                                + A * (isz(out_atts) + isz(one_hots))
                                + isz(labels_2d)) + 8),
    )

    sums = pl.pallas_call(
        kernel,
        out_shape=jax.ShapeDtypeStruct((2,), jnp.float32),
        grid=(grid_n,),
        in_specs=[
            pl.BlockSpec((tile_n, C), lambda i: (i, 0)),   # logits  (N, C)
            pl.BlockSpec((tile_n, 1), lambda i: (i, 0)),   # labels  (N, 1)
            pl.BlockSpec((tile_n, A), lambda i: (i, 0)),   # atts    (N, A)
            pl.BlockSpec((tile_n, A), lambda i: (i, 0)),   # onehots (N, A)
        ],
        out_specs=pl.BlockSpec(memory_space=pltpu.SMEM),
        compiler_params=pltpu.CompilerParams(
            dimension_semantics=("arbitrary",),            # batch reduction axis
            vmem_limit_bytes=32 * 1024 * 1024,
        ),
        cost_estimate=cost,
    )(out_classes, labels_2d, out_atts, one_hots)

    ce = sums[0]
    bce = sums[1]
    loss = ce + 0.0 * bce   # loss = ce_loss + 0 * bce_loss, as in ASDLoss.forward
    return loss, ce, bce


def asd_loss_ref(out_classes, out_atts, labels, one_hots):
    """Pure-JAX reference for validation."""
    log_p = jax.nn.log_softmax(out_classes.astype(jnp.float32), axis=1)
    ce = -jnp.mean(jnp.take_along_axis(log_p, labels[:, None], axis=1))
    x = out_atts.astype(jnp.float32)
    y = one_hots.astype(jnp.float32)
    bce = jnp.mean(jnp.maximum(x, 0.0) - x * y + jnp.log1p(jnp.exp(-jnp.abs(x))))
    return ce + 0.0 * bce, ce, bce


if __name__ == "__main__":
    num_classes = 8
    num_atts = 16
    batch = 8

    key = jax.random.PRNGKey(0)
    k1, k2, k3, k4 = jax.random.split(key, 4)
    out_classes = jax.random.normal(k1, (batch, num_classes), jnp.float32)
    out_atts = jax.random.normal(k2, (batch, num_atts), jnp.float32)
    labels = jax.random.randint(k3, (batch,), 0, num_classes, jnp.int32)
    one_hots = (jax.random.uniform(k4, (batch, num_atts)) > 0.5).astype(jnp.float32)

    loss, ce, bce = asd_loss(out_classes, out_atts, labels, one_hots)
    jax.block_until_ready((loss, ce, bce))

    loss_r, ce_r, bce_r = asd_loss_ref(out_classes, out_atts, labels, one_hots)
    assert jnp.allclose(loss, loss_r, atol=1e-5, rtol=1e-5), (loss, loss_r)
    assert jnp.allclose(ce, ce_r, atol=1e-5, rtol=1e-5), (ce, ce_r)
    assert jnp.allclose(bce, bce_r, atol=1e-5, rtol=1e-5), (bce, bce_r)

    print("KERNEL_OK")
</pallas_src>

<mosaic_0001>
module attributes {stable_mosaic.version = 11 : i64} {
  func.func @asd_loss_kernel(%arg0: i32, %arg1: memref<8x8xf32, #tpu.memory_space<vmem>>, %arg2: memref<8x1xi32, #tpu.memory_space<vmem>>, %arg3: memref<8x16xf32, #tpu.memory_space<vmem>>, %arg4: memref<8x16xf32, #tpu.memory_space<vmem>>, %arg5: memref<2xf32, #tpu.memory_space<smem>>) attributes {dimension_semantics = [#tpu.dimension_semantics<arbitrary>], iteration_bounds = array<i64: 1>, scalar_prefetch = 0 : i64, scratch_operands = 0 : i64, tpu.core_type = #tpu.core_type<tc>, window_params = [{transform_indices = @transform_0, window_bounds = array<i64: 8, 8>}, {transform_indices = @transform_1, window_bounds = array<i64: 8, 1>}, {transform_indices = @transform_2, window_bounds = array<i64: 8, 16>}, {transform_indices = @transform_3, window_bounds = array<i64: 8, 16>}, {transform_indices = @transform_4, window_bounds = array<i64: 2>}]} {
    %c0_i32 = arith.constant 0 : i32
    %0 = arith.cmpi eq, %arg0, %c0_i32 : i32
    %1 = arith.extui %0 : i1 to i32
    %c0_i32_0 = arith.constant 0 : i32
    %2 = arith.cmpi ne, %1, %c0_i32_0 : i32
    scf.if %2 {
      %cst_24 = arith.constant 0.000000e+00 : f32
      %c0_25 = arith.constant 0 : index
      %63 = memref.load %arg5[%c0_25] : memref<2xf32, #tpu.memory_space<smem>>
      memref.store %cst_24, %arg5[%c0_25] : memref<2xf32, #tpu.memory_space<smem>>
      %cst_26 = arith.constant 0.000000e+00 : f32
      %c1_27 = arith.constant 1 : index
      %64 = memref.load %arg5[%c1_27] : memref<2xf32, #tpu.memory_space<smem>>
      memref.store %cst_26, %arg5[%c1_27] : memref<2xf32, #tpu.memory_space<smem>>
    } else {
    }
    %c0 = arith.constant 0 : index
    %c0_1 = arith.constant 0 : index
    %3 = vector.load %arg1[%c0, %c0_1] : memref<8x8xf32, #tpu.memory_space<vmem>>, vector<8x8xf32>
    %c0_2 = arith.constant 0 : index
    %c0_3 = arith.constant 0 : index
    %4 = vector.load %arg2[%c0_2, %c0_3] : memref<8x1xi32, #tpu.memory_space<vmem>>, vector<8x1xi32>
    %5 = tpu.iota {dimensions = array<i32: 0>} : vector<8x1xi32>
    %c8_i32 = arith.constant 8 : i32
    %6 = arith.muli %arg0, %c8_i32 : i32
    %7 = vector.broadcast %6 : i32 to vector<8x1xi32>
    %8 = arith.addi %5, %7 : vector<8x1xi32>
    %c8_i32_4 = arith.constant 8 : i32
    %9 = vector.broadcast %c8_i32_4 : i32 to vector<8x1xi32>
    %10 = arith.cmpi slt, %8, %9 : vector<8x1xi32>
    %cst = arith.constant dense<0xFF800000> : vector<8xf32>
    %11 = vector.multi_reduction <maximumf>, %3, %cst [1] : vector<8x8xf32> to vector<8xf32>
    %12 = vector.shape_cast %11 : vector<8xf32> to vector<8x1xf32>
    %13 = vector.broadcast %12 : vector<8x1xf32> to vector<8x8xf32>
    %14 = arith.subf %3, %13 : vector<8x8xf32>
    %15 = math.exp %14 : vector<8x8xf32>
    %cst_5 = arith.constant dense<0.000000e+00> : vector<8xf32>
    %16 = vector.multi_reduction <add>, %15, %cst_5 [1] : vector<8x8xf32> to vector<8xf32>
    %17 = vector.shape_cast %16 : vector<8xf32> to vector<8x1xf32>
    %18 = math.log %17 : vector<8x1xf32>
    %19 = arith.addf %12, %18 : vector<8x1xf32>
    %20 = tpu.iota {dimensions = array<i32: 1>} : vector<8x8xi32>
    %21 = vector.broadcast %4 : vector<8x1xi32> to vector<8x8xi32>
    %22 = arith.cmpi eq, %20, %21 : vector<8x8xi32>
    %cst_6 = arith.constant 0.000000e+00 : f32
    %23 = vector.broadcast %cst_6 : f32 to vector<8x8xf32>
    %24 = arith.select %22, %3, %23 : vector<8x8xi1>, vector<8x8xf32>
    %cst_7 = arith.constant dense<0.000000e+00> : vector<8xf32>
    %25 = vector.multi_reduction <add>, %24, %cst_7 [1] : vector<8x8xf32> to vector<8xf32>
    %26 = vector.shape_cast %25 : vector<8xf32> to vector<8x1xf32>
    %27 = arith.subf %19, %26 : vector<8x1xf32>
    %cst_8 = arith.constant 0.000000e+00 : f32
    %28 = vector.broadcast %cst_8 : f32 to vector<8x1xf32>
    %29 = arith.select %10, %27, %28 : vector<8x1xi1>, vector<8x1xf32>
    %30 = vector.shape_cast %29 : vector<8x1xf32> to vector<1x8x1xf32>
    %cst_9 = arith.constant dense<0.000000e+00> : vector<1xf32>
    %31 = vector.multi_reduction <add>, %30, %cst_9 [1, 2] : vector<1x8x1xf32> to vector<1xf32>
    %32 = vector.shape_cast %31 : vector<1xf32> to vector<1x1x1xf32>
    %33 = vector.extract %32[0, 0, 0] : f32 from vector<1x1x1xf32>
    %c0_10 = arith.constant 0 : index
    %c0_11 = arith.constant 0 : index
    %34 = vector.load %arg3[%c0_10, %c0_11] : memref<8x16xf32, #tpu.memory_space<vmem>>, vector<8x16xf32>
    %c0_12 = arith.constant 0 : index
    %c0_13 = arith.constant 0 : index
    %35 = vector.load %arg4[%c0_12, %c0_13] : memref<8x16xf32, #tpu.memory_space<vmem>>, vector<8x16xf32>
    %cst_14 = arith.constant 0.000000e+00 : f32
    %36 = vector.broadcast %cst_14 : f32 to vector<8x16xf32>
    %37 = arith.maximumf %34, %36 : vector<8x16xf32>
    %38 = arith.mulf %34, %35 : vector<8x16xf32>
    %39 = arith.subf %37, %38 : vector<8x16xf32>
    %40 = math.absf %34 : vector<8x16xf32>
    %cst_15 = arith.constant 0.000000e+00 : f32
    %41 = vector.broadcast %cst_15 : f32 to vector<8x16xf32>
    %42 = arith.subf %41, %40 : vector<8x16xf32>
    %43 = math.exp %42 : vector<8x16xf32>
    %44 = math.log1p %43 : vector<8x16xf32>
    %45 = arith.addf %39, %44 : vector<8x16xf32>
    %cst_16 = arith.constant dense<0.000000e+00> : vector<8xf32>
    %46 = vector.multi_reduction <add>, %45, %cst_16 [1] : vector<8x16xf32> to vector<8xf32>
    %47 = vector.shape_cast %46 : vector<8xf32> to vector<8x1xf32>
    %cst_17 = arith.constant 0.000000e+00 : f32
    %48 = vector.broadcast %cst_17 : f32 to vector<8x1xf32>
    %49 = arith.select %10, %47, %48 : vector<8x1xi1>, vector<8x1xf32>
    %50 = vector.shape_cast %49 : vector<8x1xf32> to vector<1x8x1xf32>
    %cst_18 = arith.constant dense<0.000000e+00> : vector<1xf32>
    %51 = vector.multi_reduction <add>, %50, %cst_18 [1, 2] : vector<1x8x1xf32> to vector<1xf32>
    %52 = vector.shape_cast %51 : vector<1xf32> to vector<1x1x1xf32>
    %53 = vector.extract %52[0, 0, 0] : f32 from vector<1x1x1xf32>
    %c0_19 = arith.constant 0 : index
    %54 = memref.load %arg5[%c0_19] : memref<2xf32, #tpu.memory_space<smem>>
    %55 = arith.addf %54, %33 : f32
    %c0_20 = arith.constant 0 : index
    %56 = memref.load %arg5[%c0_20] : memref<2xf32, #tpu.memory_space<smem>>
    memref.store %55, %arg5[%c0_20] : memref<2xf32, #tpu.memory_space<smem>>
    %c1 = arith.constant 1 : index
    %57 = memref.load %arg5[%c1] : memref<2xf32, #tpu.memory_space<smem>>
    %58 = arith.addf %57, %53 : f32
    %c1_21 = arith.constant 1 : index
    %59 = memref.load %arg5[%c1_21] : memref<2xf32, #tpu.memory_space<smem>>
    memref.store %58, %arg5[%c1_21] : memref<2xf32, #tpu.memory_space<smem>>
    %c0_i32_22 = arith.constant 0 : i32
    %60 = arith.cmpi eq, %arg0, %c0_i32_22 : i32
    %61 = arith.extui %60 : i1 to i32
    %c0_i32_23 = arith.constant 0 : i32
    %62 = arith.cmpi ne, %61, %c0_i32_23 : i32
    scf.if %62 {
      %c0_24 = arith.constant 0 : index
      %63 = memref.load %arg5[%c0_24] : memref<2xf32, #tpu.memory_space<smem>>
      %cst_25 = arith.constant 1.250000e-01 : f32
      %64 = arith.mulf %63, %cst_25 : f32
      %c0_26 = arith.constant 0 : index
      %65 = memref.load %arg5[%c0_26] : memref<2xf32, #tpu.memory_space<smem>>
      memref.store %64, %arg5[%c0_26] : memref<2xf32, #tpu.memory_space<smem>>
      %c1_27 = arith.constant 1 : index
      %66 = memref.load %arg5[%c1_27] : memref<2xf32, #tpu.memory_space<smem>>
      %cst_28 = arith.constant 7.812500e-03 : f32
      %67 = arith.mulf %66, %cst_28 : f32
      %c1_29 = arith.constant 1 : index
      %68 = memref.load %arg5[%c1_29] : memref<2xf32, #tpu.memory_space<smem>>
      memref.store %67, %arg5[%c1_29] : memref<2xf32, #tpu.memory_space<smem>>
    } else {
    }
    return
  }
  func.func @transform_0(%arg0: i32) -> (i32, i32) {
    %c0_i32 = arith.constant 0 : i32
    %c0_i32_0 = arith.constant 0 : i32
    return %arg0, %c0_i32 : i32, i32
  }
  func.func @transform_1(%arg0: i32) -> (i32, i32) {
    %c0_i32 = arith.constant 0 : i32
    %c0_i32_0 = arith.constant 0 : i32
    return %arg0, %c0_i32 : i32, i32
  }
  func.func @transform_2(%arg0: i32) -> (i32, i32) {
    %c0_i32 = arith.constant 0 : i32
    %c0_i32_0 = arith.constant 0 : i32
    return %arg0, %c0_i32 : i32, i32
  }
  func.func @transform_3(%arg0: i32) -> (i32, i32) {
    %c0_i32 = arith.constant 0 : i32
    %c0_i32_0 = arith.constant 0 : i32
    return %arg0, %c0_i32 : i32, i32
  }
  func.func @transform_4(%arg0: i32) -> i32 {
    %c0_i32 = arith.constant 0 : i32
    %c0_i32_0 = arith.constant 0 : i32
    return %c0_i32 : i32
  }
}

</mosaic_0001>

<llo_original>
// kernel: tpu_custom_call.1
$region0: #{tpu_custom_call.1}
  #allocation0 [shape = 'u32[]', space=smem, size = 0x4, offset = 0x4, fixed_abs, tag = 'smem constant byte address 0x4 - core index']
  #allocation1 [shape = 'u32[144,128]{1,0:T(1,128)}', space=vmem, size = 0x12000, scoped, tag = 'internal scratch']
  %s0 = inlined_call_operand.vmem [shape: f32[8,8], index: 0, kind: input, shape index: {}]
  %s1 = inlined_call_operand.vmem [shape: s32[8,1], index: 1, kind: input, shape index: {}]
  %s2 = inlined_call_operand.vmem [shape: f32[8,16], index: 2, kind: input, shape index: {}]
  %s3 = inlined_call_operand.hbm [shape: f32[8,16], index: 3, kind: input, shape index: {}]
  %s4 = inlined_call_operand.hbm [shape: f32[2], index: 4, kind: output, shape index: {}]
  %s5 = sld [smem:[#allocation0]]
  $region38: #{tpu_custom_call.1} parent=0
    _
  %s7 = ssub.s32 1, %s5
  %s8 = scalar_select 0, %s7, %s5
  $region1: #{tpu_custom_call.1} parent=0
    #allocation2 [shape = 'u8[4096]{0}', space=vmem, size = 0x1000, scoped, tag = 'input window, operand 3, single buffered']
    #allocation3 [shape = 's32[1]{0}', space=sflag, size = 0x4, scoped, tag = 'scoped memory for tpu_custom_call.1']
    #allocation4 [shape = 's32[1]{0}', space=sflag, size = 0x4, scoped, tag = 'scoped memory for tpu_custom_call.1']
    #allocation5 [shape = 'u8[512]{0}', space=smem, size = 0x200, scoped, tag = 'output window, operand 0, single buffered']
    %9 = vsyncpa [#allocation3], 0
    %10 = vsyncpa [#allocation4], 0
    // Predicated region
    $region2: #{tpu_custom_call.1} parent=1 // pred_check
      _
    $region3: #{tpu_custom_call.1} parent=1 // pred_check_branch
      %12 = sbr.rel (0) target = $region5
    $region4: #{tpu_custom_call.1} parent=1 // pred_region
      _
    $region5: #{tpu_custom_call.1} parent=1 // pred_fallthru
      _
    // Predicated region
    $region6: #{tpu_custom_call.1} parent=1 // pred_check
      _
    $region7: #{tpu_custom_call.1} parent=1 // pred_check_branch
      %14 = sbr.rel (0) target = $region9
    $region8: #{tpu_custom_call.1} parent=1 // pred_region
      _
    $region9: #{tpu_custom_call.1} parent=1 // pred_fallthru
      _
    // Predicated region
    $region10: #{tpu_custom_call.1} parent=1 // pred_check
      _
    $region11: #{tpu_custom_call.1} parent=1 // pred_check_branch
      %16 = sbr.rel (0) target = $region13
    $region12: #{tpu_custom_call.1} parent=1 // pred_region
      _
    $region13: #{tpu_custom_call.1} parent=1 // pred_fallthru
      _
    // Predicated region
    $region14: #{tpu_custom_call.1} parent=1 // pred_check
      _
    $region15: #{tpu_custom_call.1} parent=1 // pred_check_branch
      %18 = sbr.rel (0) target = $region17
    $region16: #{tpu_custom_call.1} parent=1 // pred_region
      %s20 = ssub.s32 128, 128
      %21 = vsyncadd [#allocation3], %s20
      %s23 = sshll.u32 [#allocation2], 4
      %s24 = int_to_ptr.vmem [resolvable:$true] %s23
      %26 = dma.hbm_to_vmem [thread:$0]  %s3, 128, %s24, [#allocation3]
    $region17: #{tpu_custom_call.1} parent=1 // pred_fallthru
      _
    // Predicated region
    $region18: #{tpu_custom_call.1} parent=1 // pred_check
      _
    $region19: #{tpu_custom_call.1} parent=1 // pred_check_branch
      %28 = sbr.rel (0) target = $region21
    $region20: #{tpu_custom_call.1} parent=1 // pred_region
      %29 = dma.done [#allocation3], 128
    $region21: #{tpu_custom_call.1} parent=1 // pred_fallthru
      _
    %p30 = scmp.eq.s32.totalorder 0, 0
    // Predicated region
    $region22: #{tpu_custom_call.1} parent=1 // pred_check
      %p31 = pneg %p30
    $region23: #{tpu_custom_call.1} parent=1 // pred_check_branch
      %33 = sbr.rel (%p31) target = $region25
    $region24: #{tpu_custom_call.1} parent=1 // pred_region
      %s34 = scalar_lea.smem [#allocation5], 0
      %35 = sst [smem:[%s34]] 0.0
      %s36 = scalar_lea.smem [#allocation5], 1
      %37 = sst [smem:[%s36]] 0.0
    $region25: #{tpu_custom_call.1} parent=1 // pred_fallthru
      _
    %v38 = vld [vmem:[%s0] sm:$0xff]
    %v39 = vld [vmem:[%s1] sm:$0xff]
    %v40 = vlaneseq
    %v41 = vshrl.u32 %v40, 7
    %s42 = smul.u32 0, 8
    %v43 = vstv %s42
    %v44 = vadd.s32 %v41, %v43
    %vm45 = vcmp.lt.s32.totalorder %v44, 8
    %vm46 = vcmask 64512
    %v47 = vsel %vm46, %v38, -inf
    %48 = vmax.xlane.f32.xlu0 %v47
    %v49 = vpop.xlane.xlu0 %48
    %v50 = vsub.f32 %v38, %v49
    %v51 = vmul.f32 %v50, 1.442695
    %v52 = vpow.pop %v51
    %v53 = vsel %vm46, %v52, 0.0
    %54 = vadd.xlane.f32.xlu0 %v53
    %v55 = vpop.xlane.xlu0 %54
    %v56 = vlog2.pop %v55
    %v57 = vmul.f32 %v56, 0.6931472
    %v58 = vadd.f32 %v49, %v57
    %v59 = vlaneseq
    %v60 = vand.u32 %v59, 127
    %61 = vset.pattern.permute.xlu0 0
    %62 = vperm.xlu0 %61, %v39
    %v63 = vpop.permute.xlu0 %62
    %vm64 = vcmp.eq.s32.totalorder %v60, %v63
    %v65 = vsel %vm64, %v38, 0.0
    %v66 = vsel %vm46, %v65, 0.0
    %67 = vadd.xlane.f32.xlu0 %v66
    %v68 = vpop.xlane.xlu0 %67
    %v69 = vsub.f32 %v58, %v68
    %v70 = vsel %vm45, %v69, 0.0
    %vm71 = vcmask 7168
    %v72 = vsel %vm71, %v70, 0.0
    %73 = vadd.xlane.f32.xlu0 %v72
    %v74 = vpop.xlane.xlu0 %73
    %v75 = vrot.slane %v74, 4
    %v76 = vadd.f32 %v74, %v75
    %v77 = vrot.slane %v76, 2
    %v78 = vadd.f32 %v76, %v77
    %v79 = vrot.slane %v78, 1
    %v80 = vadd.f32 %v78, %v79
    %s81 = vtos %v80
    %v82 = vld [vmem:[%s2] sm:$0xff]
    %v83 = vld [vmem:[#allocation2] sm:$0xff]
    %v84 = vmax.f32 %v82, 0.0
    %v85 = vmul.f32 %v82, %v83
    %v86 = vsub.f32 %v84, %v85
    %v87 = vand.u32 2147483647, %v82
    %v88 = vsub.f32 0.0, %v87
    %v89 = vmul.f32 %v88, 1.442695
    %v90 = vpow.pop %v89
    %v91 = vadd.f32 %v90, 1.0
    %v92 = vlog2.pop %v91
    %v93 = vmul.f32 %v92, 0.6931472
    %v94 = vmul.f32 -0.5, %v90
    %v95 = vadd.f32 %v94, 1.0
    %v96 = vmul.f32 %v95, %v90
    %v97 = vand.u32 2147483647, %v90
    %vm98 = vcmp.lt.f32.partialorder %v97, 0.0004427343
    %v99 = vsel %vm98, %v96, %v93
    %v100 = vadd.f32 %v86, %v99
    %vm101 = vcmask 130048
    %v102 = vsel %vm101, %v100, 0.0
    %103 = vadd.xlane.f32.xlu0 %v102
    %v104 = vpop.xlane.xlu0 %103
    %v105 = vsel %vm45, %v104, 0.0
    %v106 = vsel %vm71, %v105, 0.0
    %107 = vadd.xlane.f32.xlu0 %v106
    %v108 = vpop.xlane.xlu0 %107
    %v109 = vrot.slane %v108, 4
    %v110 = vadd.f32 %v108, %v109
    %v111 = vrot.slane %v110, 2
    %v112 = vadd.f32 %v110, %v111
    %v113 = vrot.slane %v112, 1
    %v114 = vadd.f32 %v112, %v113
    %s115 = vtos %v114
    %s116 = sld [smem:[#allocation5]]
    %s117 = sadd.f32 %s116, %s81
    %s118 = scalar_lea.smem [#allocation5], 0
    %119 = sst [smem:[%s118]] %s117
    %s120 = sld [smem:[#allocation5 + $0x1]]
    %s121 = sadd.f32 %s120, %s115
    %s122 = scalar_lea.smem [#allocation5], 1
    %123 = sst [smem:[%s122]] %s121
    // Predicated region
    $region26: #{tpu_custom_call.1} parent=1 // pred_check
      %p124 = pneg %p30
    $region27: #{tpu_custom_call.1} parent=1 // pred_check_branch
      %126 = sbr.rel (%p124) target = $region29
    $region28: #{tpu_custom_call.1} parent=1 // pred_region
      %s127 = sld [smem:[#allocation5]]
      %s128 = smul.f32 %s127, 0.125
      %129 = sst [smem:[%s118]] %s128
      %s130 = sld [smem:[#allocation5 + $0x1]]
      %s131 = smul.f32 %s130, 0.0078125
      %132 = sst [smem:[%s122]] %s131
    $region29: #{tpu_custom_call.1} parent=1 // pred_fallthru
      _
    // Predicated region
    $region30: #{tpu_custom_call.1} parent=1 // pred_check
      _
    $region31: #{tpu_custom_call.1} parent=1 // pred_check_branch
      %134 = sbr.rel (0) target = $region33
    $region32: #{tpu_custom_call.1} parent=1 // pred_region
      %s136 = ssub.s32 16, 16
      %137 = vsyncadd [#allocation4], %s136
      %140 = dma.smem_to_hbm [#allocation5], 16, %s4, [#allocation4]
    $region33: #{tpu_custom_call.1} parent=1 // pred_fallthru
      _
    // Predicated region
    $region34: #{tpu_custom_call.1} parent=1 // pred_check
      _
    $region35: #{tpu_custom_call.1} parent=1 // pred_check_branch
      %142 = sbr.rel (0) target = $region37
    $region36: #{tpu_custom_call.1} parent=1 // pred_region
      %143 = dma.done [#allocation4], 16
    $region37: #{tpu_custom_call.1} parent=1 // pred_fallthru
      _
    %144 = sfence
    %145 = vsyncpa [#allocation3], 1
    %146 = vsyncpa [#allocation4], 1

</llo_original>
